<compile_context>
chip_gen: v7x
topology: tpu7x:2x2x1
jax: 0.10.0
libtpu: 0.0.40
codegen_flags: <defaults>
</compile_context>

<pallas_src>
import jax
import jax.numpy as jnp
from jax.experimental import pallas as pl
from jax.experimental.pallas import tpu as pltpu


def _round_up(x, m):
    return ((x + m - 1) // m) * m


def _vmem_capacity_bytes():
    try:
        return int(pltpu.get_tpu_info().vmem_capacity_bytes)
    except Exception:
        return 64 * 1024 * 1024  # conservative: v7x per-TC VMEM


def _fusion_kernel(text_ref, audio_ref, video_ref, w1_ref, w2_ref, misc_ref,
                   out_ref):
    f32 = jnp.float32
    kt = text_ref.shape[-1]        # T_t * D_t (flattened, mean folded in W1)
    ka = audio_ref.shape[-1]
    hp = w2_ref.shape[-1]

    # widen bf16 activations to f32 for the MXU dots (f32 accumulate).
    t = text_ref[...].astype(f32)   # [TB, kt]
    a = audio_ref[...].astype(f32)  # [TB, ka]
    v = video_ref[...].astype(f32)  # [TB, kv]

    # --- packed small operands (single resident [8, H3P] VMEM tile) ---
    b1 = misc_ref[0:1, :]           # [1, H3P]  concat of bt|ba|bv (zero padded)
    bf = misc_ref[1:2, :hp]         # [1, HP]
    wo = misc_ref[2:3, :hp]         # [1, HP]   head weight as a lane row
    bo = misc_ref[3:4, 0:1]         # [1, 1]

    # --- fused mean-pool + per-modality projection: block-diagonal W1 with
    # the temporal repeat/scale folded in.  Sum of the 3 row-slab dots ==
    # [mean_t|mean_a|mean_v] @ blockdiag(wt, wa, wv). ---
    h_pre = (
        jnp.dot(t, w1_ref[:kt, :], preferred_element_type=f32)
        + jnp.dot(a, w1_ref[kt:kt + ka, :], preferred_element_type=f32)
        + jnp.dot(v, w1_ref[kt + ka:, :], preferred_element_type=f32)
        + b1
    )
    h = jnp.maximum(h_pre, 0.0)                                     # [TB, H3P]

    # --- fusion linear: single stacked [3H, H] matmul (lane-padded) ---
    fused = jnp.maximum(
        jnp.dot(h, w2_ref[...], preferred_element_type=f32) + bf, 0.0)  # [TB, HP]

    # --- regression head on VPU + XLU (no N=1 MXU matmul) ---
    head = jnp.sum(fused * wo, axis=-1, keepdims=True) + bo         # [TB, 1]

    out_ref[...] = head.astype(out_ref.dtype)                       # [TB, 1]


def pack_params(params, seq_lens, feat_dims, hidden):
    """Pack weights/biases into 3 lane-dense arrays.

    The per-modality temporal mean is folded into W1 by repeating each
    (1/T-scaled) weight block T times along the flattened [T*D] axis.
    """
    t_t, t_a, t_v = seq_lens
    d_t, d_a, d_v = feat_dims
    H = hidden
    kt, ka, kv = t_t * d_t, t_a * d_a, t_v * d_v
    h3p = _round_up(3 * H, 128)
    hp = _round_up(H, 128)

    w1 = jnp.zeros((kt + ka + kv, h3p), jnp.float32)       # block-diagonal
    w1 = w1.at[:kt, 0:H].set(jnp.tile(params["wt"] / t_t, (t_t, 1)))
    w1 = w1.at[kt:kt + ka, H:2 * H].set(jnp.tile(params["wa"] / t_a, (t_a, 1)))
    w1 = w1.at[kt + ka:, 2 * H:3 * H].set(jnp.tile(params["wv"] / t_v, (t_v, 1)))

    w2 = jnp.zeros((h3p, hp), jnp.float32)                  # stacked fusion
    w2 = w2.at[0:H, 0:H].set(params["wft"])
    w2 = w2.at[H:2 * H, 0:H].set(params["wfa"])
    w2 = w2.at[2 * H:3 * H, 0:H].set(params["wfv"])

    misc = jnp.zeros((8, h3p), jnp.float32)                 # all biases + head
    misc = misc.at[0, 0:H].set(params["bt"][0])
    misc = misc.at[0, H:2 * H].set(params["ba"][0])
    misc = misc.at[0, 2 * H:3 * H].set(params["bv"][0])
    misc = misc.at[1, 0:H].set(params["bf"][0])
    misc = misc.at[2, 0:H].set(params["wo"][:, 0])
    misc = misc.at[3, 0].set(params["bo"][0, 0])
    return w1, w2, misc


def amio_forward(text_x, audio_x, video_x, w1, w2, misc, *, block_b=None,
                 vmem_limit_bytes=None):
    """Pallas forward.  text_x/audio_x/video_x: [B, T_m, D_m] (f32 or bf16)."""
    B, t_t, d_t = text_x.shape
    _, t_a, d_a = audio_x.shape
    _, t_v, d_v = video_x.shape
    kt, ka, kv = t_t * d_t, t_a * d_a, t_v * d_v
    h3p = w1.shape[1]
    hp = w2.shape[1]
    assert w1.shape[0] == kt + ka + kv, "w1 was packed for different shapes"

    # Free reshape (row-major contiguous): lane-dense activation slabs.
    t_flat = text_x.reshape(B, kt)
    a_flat = audio_x.reshape(B, ka)
    v_flat = video_x.reshape(B, kv)
    act_bytes = max(t_flat.dtype.itemsize, a_flat.dtype.itemsize,
                    v_flat.dtype.itemsize)

    vmem_cap = _vmem_capacity_bytes()
    if vmem_limit_bytes is None:
        vmem_limit_bytes = min(3 * vmem_cap // 4, 96 * 1024 * 1024)
    tile_budget = vmem_cap // 6   # per-step activation-tile budget with headroom

    if block_b is None:
        lanes_in = sum(_round_up(k, 128) for k in (kt, ka, kv))
        per_row = (
            2 * act_bytes * lanes_in        # double-buffered activation tiles
            + 4 * lanes_in                  # f32 widening temporaries in-kernel
            + 4 * (2 * h3p + hp + 2 * 128)  # h_pre/h, fused, padded output x2
        )
        cap = max(8, (tile_budget // per_row) // 8 * 8)
        if B <= 8:
            block_b = B                      # single block (dims == full array)
        else:
            # keep >= ~4 grid steps so DMA/compute overlap and (on v7x) the
            # dual-TensorCore "parallel" sharding actually kick in.
            block_b = max(8, min(cap, _round_up(pl.cdiv(B, 4), 8)))
    tb = min(block_b, B)
    grid = (pl.cdiv(B, tb),)
    # NOTE: no wrapper-side batch padding.  A partial last block reads/writes
    # only valid rows; any unspecified VMEM rows feed output rows >= B which
    # are never written back (output is exactly [B, 1]).

    k_total = kt + ka + kv
    flops = 2 * B * (k_total * h3p + h3p * hp + 2 * hp)
    bytes_accessed = (act_bytes * B * k_total + 4 * B
                      + 4 * (w1.size + w2.size + misc.size))

    out = pl.pallas_call(
        _fusion_kernel,
        out_shape=jax.ShapeDtypeStruct((B, 1), jnp.float32),
        grid=grid,
        in_specs=[
            pl.BlockSpec((tb, kt), lambda i: (i, 0)),
            pl.BlockSpec((tb, ka), lambda i: (i, 0)),
            pl.BlockSpec((tb, kv), lambda i: (i, 0)),
            pl.BlockSpec(w1.shape, lambda i: (0, 0)),    # resident weights
            pl.BlockSpec(w2.shape, lambda i: (0, 0)),
            pl.BlockSpec(misc.shape, lambda i: (0, 0)),
        ],
        out_specs=pl.BlockSpec((tb, 1), lambda i: (i, 0)),
        compiler_params=pltpu.CompilerParams(
            dimension_semantics=("parallel",),
            vmem_limit_bytes=vmem_limit_bytes),
        cost_estimate=pl.CostEstimate(
            flops=flops, transcendentals=0, bytes_accessed=bytes_accessed),
    )(t_flat, a_flat, v_flat, w1, w2, misc)

    return out


def init_params(key, d_text, d_audio, d_video, hidden):
    ks = jax.random.split(key, 8)

    def lin(k, fan_in, shape):
        return jax.random.normal(k, shape, jnp.float32) / jnp.sqrt(fan_in)

    return {
        "wt": lin(ks[0], d_text, (d_text, hidden)),
        "bt": jnp.zeros((1, hidden), jnp.float32),
        "wa": lin(ks[1], d_audio, (d_audio, hidden)),
        "ba": jnp.zeros((1, hidden), jnp.float32),
        "wv": lin(ks[2], d_video, (d_video, hidden)),
        "bv": jnp.zeros((1, hidden), jnp.float32),
        "wft": lin(ks[3], 3 * hidden, (hidden, hidden)),
        "wfa": lin(ks[4], 3 * hidden, (hidden, hidden)),
        "wfv": lin(ks[5], 3 * hidden, (hidden, hidden)),
        "bf": jnp.zeros((1, hidden), jnp.float32),
        "wo": lin(ks[6], hidden, (hidden, 1)),
        "bo": jnp.zeros((1, 1), jnp.float32),
    }


def _reference(text_x, audio_x, video_x, p):
    """Pure-JAX reference (matches the original per-modality math)."""
    relu = lambda x: jnp.maximum(x, 0.0)
    h_t = relu(text_x.mean(1) @ p["wt"] + p["bt"])
    h_a = relu(audio_x.mean(1) @ p["wa"] + p["ba"])
    h_v = relu(video_x.mean(1) @ p["wv"] + p["bv"])
    fused = relu(h_t @ p["wft"] + h_a @ p["wfa"] + h_v @ p["wfv"] + p["bf"])
    return fused @ p["wo"] + p["bo"]


if __name__ == "__main__":
    key = jax.random.PRNGKey(0)
    k_t, k_a, k_v, k_p = jax.random.split(key, 4)

    B = 2
    T_text, D_text = 8, 32     # text_x:  [B, 8, 32]
    T_audio, D_audio = 8, 16   # audio_x: [B, 8, 16]
    T_video, D_video = 8, 20   # video_x: [B, 8, 20]
    HIDDEN = 32

    text_x = jax.random.normal(k_t, (B, T_text, D_text), jnp.float32)
    audio_x = jax.random.normal(k_a, (B, T_audio, D_audio), jnp.float32)
    video_x = jax.random.normal(k_v, (B, T_video, D_video), jnp.float32)

    params = init_params(k_p, D_text, D_audio, D_video, HIDDEN)
    w1, w2, misc = pack_params(
        params,
        seq_lens=(T_text, T_audio, T_video),
        feat_dims=(D_text, D_audio, D_video),
        hidden=HIDDEN,
    )

    # Activations live in HBM as bf16 (halves the dominant read traffic); the
    # reference consumes the same bf16-rounded values so the comparison
    # isolates kernel correctness from the storage quantization.
    t_bf = text_x.astype(jnp.bfloat16)
    a_bf = audio_x.astype(jnp.bfloat16)
    v_bf = video_x.astype(jnp.bfloat16)

    out = amio_forward(t_bf, a_bf, v_bf, w1, w2, misc)
    jax.block_until_ready(out)

    ref = _reference(t_bf.astype(jnp.float32), a_bf.astype(jnp.float32),
                     v_bf.astype(jnp.float32), params)
    assert out.shape == (B, 1)
    assert jnp.allclose(out, ref, atol=2e-4, rtol=2e-4)

    print("KERNEL_OK")
</pallas_src>

<mosaic_0001>
module attributes {stable_mosaic.version = 11 : i64} {
  func.func @_fusion_kernel(%arg0: i32, %arg1: memref<2x256xbf16, #tpu.memory_space<vmem>>, %arg2: memref<2x128xbf16, #tpu.memory_space<vmem>>, %arg3: memref<2x160xbf16, #tpu.memory_space<vmem>>, %arg4: memref<544x128xf32, #tpu.memory_space<vmem>>, %arg5: memref<128x128xf32, #tpu.memory_space<vmem>>, %arg6: memref<8x128xf32, #tpu.memory_space<vmem>>, %arg7: memref<2x1xf32, #tpu.memory_space<vmem>>) attributes {dimension_semantics = [#tpu.dimension_semantics<parallel>], iteration_bounds = array<i64: 1>, scalar_prefetch = 0 : i64, scratch_operands = 0 : i64, tpu.core_type = #tpu.core_type<tc>, window_params = [{transform_indices = @transform_0, window_bounds = array<i64: 2, 256>}, {transform_indices = @transform_1, window_bounds = array<i64: 2, 128>}, {transform_indices = @transform_2, window_bounds = array<i64: 2, 160>}, {pipeline_mode = #tpu.pipeline_mode<synchronous>, transform_indices = @transform_3, window_bounds = array<i64: 544, 128>}, {pipeline_mode = #tpu.pipeline_mode<synchronous>, transform_indices = @transform_4, window_bounds = array<i64: 128, 128>}, {pipeline_mode = #tpu.pipeline_mode<synchronous>, transform_indices = @transform_5, window_bounds = array<i64: 8, 128>}, {transform_indices = @transform_6, window_bounds = array<i64: 2, 1>}]} {
    %c0 = arith.constant 0 : index
    %c0_0 = arith.constant 0 : index
    %0 = vector.load %arg1[%c0, %c0_0] : memref<2x256xbf16, #tpu.memory_space<vmem>>, vector<2x256xbf16>
    %1 = arith.extf %0 : vector<2x256xbf16> to vector<2x256xf32>
    %c0_1 = arith.constant 0 : index
    %c0_2 = arith.constant 0 : index
    %2 = vector.load %arg2[%c0_1, %c0_2] : memref<2x128xbf16, #tpu.memory_space<vmem>>, vector<2x128xbf16>
    %3 = arith.extf %2 : vector<2x128xbf16> to vector<2x128xf32>
    %c0_3 = arith.constant 0 : index
    %c0_4 = arith.constant 0 : index
    %4 = vector.load %arg3[%c0_3, %c0_4] : memref<2x160xbf16, #tpu.memory_space<vmem>>, vector<2x160xbf16>
    %5 = arith.extf %4 : vector<2x160xbf16> to vector<2x160xf32>
    %c0_5 = arith.constant 0 : index
    %c0_6 = arith.constant 0 : index
    %6 = vector.load %arg6[%c0_5, %c0_6] : memref<8x128xf32, #tpu.memory_space<vmem>>, vector<1x128xf32>
    %c1 = arith.constant 1 : index
    %c0_7 = arith.constant 0 : index
    %7 = vector.load %arg6[%c1, %c0_7] : memref<8x128xf32, #tpu.memory_space<vmem>>, vector<1x128xf32>
    %c2 = arith.constant 2 : index
    %c0_8 = arith.constant 0 : index
    %8 = vector.load %arg6[%c2, %c0_8] : memref<8x128xf32, #tpu.memory_space<vmem>>, vector<1x128xf32>
    %c3 = arith.constant 3 : index
    %c0_9 = arith.constant 0 : index
    %9 = vector.load %arg6[%c3, %c0_9] : memref<8x128xf32, #tpu.memory_space<vmem>>, vector<1x1xf32>
    %c0_10 = arith.constant 0 : index
    %c0_11 = arith.constant 0 : index
    %10 = vector.load %arg4[%c0_10, %c0_11] : memref<544x128xf32, #tpu.memory_space<vmem>>, vector<256x128xf32>
    %cst = arith.constant dense<0.000000e+00> : vector<2x128xf32>
    %11 = tpu.matmul %1, %10, %cst {dimension_numbers = #tpu.dot_dimension_numbers<[1], [0], [0], [1], [0, 0, 1, 1], [], []>} : vector<2x256xf32>, vector<256x128xf32>, vector<2x128xf32> -> vector<2x128xf32>
    %c256 = arith.constant 256 : index
    %c0_12 = arith.constant 0 : index
    %12 = vector.load %arg4[%c256, %c0_12] : memref<544x128xf32, #tpu.memory_space<vmem>>, vector<128x128xf32>
    %cst_13 = arith.constant dense<0.000000e+00> : vector<2x128xf32>
    %13 = tpu.matmul %3, %12, %cst_13 {dimension_numbers = #tpu.dot_dimension_numbers<[1], [0], [0], [1], [0, 0, 1, 1], [], []>} : vector<2x128xf32>, vector<128x128xf32>, vector<2x128xf32> -> vector<2x128xf32>
    %14 = arith.addf %11, %13 : vector<2x128xf32>
    %c384 = arith.constant 384 : index
    %c0_14 = arith.constant 0 : index
    %15 = vector.load %arg4[%c384, %c0_14] : memref<544x128xf32, #tpu.memory_space<vmem>>, vector<160x128xf32>
    %cst_15 = arith.constant dense<0.000000e+00> : vector<2x128xf32>
    %16 = tpu.matmul %5, %15, %cst_15 {dimension_numbers = #tpu.dot_dimension_numbers<[1], [0], [0], [1], [0, 0, 1, 1], [], []>} : vector<2x160xf32>, vector<160x128xf32>, vector<2x128xf32> -> vector<2x128xf32>
    %17 = arith.addf %14, %16 : vector<2x128xf32>
    %18 = vector.broadcast %6 : vector<1x128xf32> to vector<2x128xf32>
    %19 = arith.addf %17, %18 : vector<2x128xf32>
    %cst_16 = arith.constant 0.000000e+00 : f32
    %20 = vector.broadcast %cst_16 : f32 to vector<2x128xf32>
    %21 = arith.maximumf %19, %20 : vector<2x128xf32>
    %c0_17 = arith.constant 0 : index
    %c0_18 = arith.constant 0 : index
    %22 = vector.load %arg5[%c0_17, %c0_18] : memref<128x128xf32, #tpu.memory_space<vmem>>, vector<128x128xf32>
    %cst_19 = arith.constant dense<0.000000e+00> : vector<2x128xf32>
    %23 = tpu.matmul %21, %22, %cst_19 {dimension_numbers = #tpu.dot_dimension_numbers<[1], [0], [0], [1], [0, 0, 1, 1], [], []>} : vector<2x128xf32>, vector<128x128xf32>, vector<2x128xf32> -> vector<2x128xf32>
    %24 = vector.broadcast %7 : vector<1x128xf32> to vector<2x128xf32>
    %25 = arith.addf %23, %24 : vector<2x128xf32>
    %cst_20 = arith.constant 0.000000e+00 : f32
    %26 = vector.broadcast %cst_20 : f32 to vector<2x128xf32>
    %27 = arith.maximumf %25, %26 : vector<2x128xf32>
    %28 = vector.broadcast %8 : vector<1x128xf32> to vector<2x128xf32>
    %29 = arith.mulf %27, %28 : vector<2x128xf32>
    %cst_21 = arith.constant dense<0.000000e+00> : vector<2xf32>
    %30 = vector.multi_reduction <add>, %29, %cst_21 [1] : vector<2x128xf32> to vector<2xf32>
    %31 = vector.shape_cast %30 : vector<2xf32> to vector<2x1xf32>
    %32 = vector.broadcast %9 : vector<1x1xf32> to vector<2x1xf32>
    %33 = arith.addf %31, %32 : vector<2x1xf32>
    %c0_22 = arith.constant 0 : index
    %c0_23 = arith.constant 0 : index
    %34 = vector.load %arg7[%c0_22, %c0_23] : memref<2x1xf32, #tpu.memory_space<vmem>>, vector<2x1xf32>
    tpu.vector_store %arg7[%c0_22, %c0_23], %33 {strides = array<i32>} : memref<2x1xf32, #tpu.memory_space<vmem>>, vector<2x1xf32>,
    return
  }
  func.func @transform_0(%arg0: i32) -> (i32, i32) {
    %c0_i32 = arith.constant 0 : i32
    %c0_i32_0 = arith.constant 0 : i32
    return %arg0, %c0_i32 : i32, i32
  }
  func.func @transform_1(%arg0: i32) -> (i32, i32) {
    %c0_i32 = arith.constant 0 : i32
    %c0_i32_0 = arith.constant 0 : i32
    return %arg0, %c0_i32 : i32, i32
  }
  func.func @transform_2(%arg0: i32) -> (i32, i32) {
    %c0_i32 = arith.constant 0 : i32
    %c0_i32_0 = arith.constant 0 : i32
    return %arg0, %c0_i32 : i32, i32
  }
  func.func @transform_3(%arg0: i32) -> (i32, i32) {
    %c0_i32 = arith.constant 0 : i32
    %c0_i32_0 = arith.constant 0 : i32
    %c0_i32_1 = arith.constant 0 : i32
    return %c0_i32, %c0_i32_0 : i32, i32
  }
  func.func @transform_4(%arg0: i32) -> (i32, i32) {
    %c0_i32 = arith.constant 0 : i32
    %c0_i32_0 = arith.constant 0 : i32
    %c0_i32_1 = arith.constant 0 : i32
    return %c0_i32, %c0_i32_0 : i32, i32
  }
  func.func @transform_5(%arg0: i32) -> (i32, i32) {
    %c0_i32 = arith.constant 0 : i32
    %c0_i32_0 = arith.constant 0 : i32
    %c0_i32_1 = arith.constant 0 : i32
    return %c0_i32, %c0_i32_0 : i32, i32
  }
  func.func @transform_6(%arg0: i32) -> (i32, i32) {
    %c0_i32 = arith.constant 0 : i32
    %c0_i32_0 = arith.constant 0 : i32
    return %arg0, %c0_i32 : i32, i32
  }
}

</mosaic_0001>

<llo_original>
// kernel: tpu_custom_call.1
$region0: #{tpu_custom_call.1}
  #allocation0 [shape = 'u32[]', space=smem, size = 0x4, offset = 0x4, fixed_abs, tag = 'smem constant byte address 0x4 - core index']
  #allocation1 [shape = 'u32[144,128]{1,0:T(1,128)}', space=vmem, size = 0x12000, scoped, tag = 'internal scratch']
  %s0 = inlined_call_operand.hbm [shape: bf16[2,256], index: 0, kind: input, shape index: {}]
  %s1 = inlined_call_operand.vmem [shape: bf16[2,128], index: 1, kind: input, shape index: {}]
  %s2 = inlined_call_operand.vmem [shape: bf16[2,160], index: 2, kind: input, shape index: {}]
  %s3 = inlined_call_operand.hbm [shape: f32[544,128], index: 3, kind: input, shape index: {}]
  %s4 = inlined_call_operand.hbm [shape: f32[128,128], index: 4, kind: input, shape index: {}]
  %s5 = inlined_call_operand.vmem [shape: f32[8,128], index: 5, kind: input, shape index: {}]
  %s6 = inlined_call_operand.vmem [shape: f32[2,1], index: 6, kind: output, shape index: {}]
  %s7 = sld [smem:[#allocation0]]
  $region46: #{tpu_custom_call.1} parent=0
    _
  %s9 = ssub.s32 1, %s7
  %s10 = scalar_select 0, %s9, %s7
  $region1: #{tpu_custom_call.1} parent=0
    #allocation2 [shape = 'u8[1024]{0}', space=vmem, size = 0x400, scoped, tag = 'input window, operand 0, single buffered']
    #allocation3 [shape = 's32[1]{0}', space=sflag, size = 0x4, scoped, tag = 'scoped memory for tpu_custom_call.1']
    #allocation4 [shape = 'u8[278528]{0}', space=vmem, size = 0x44000, scoped, tag = 'input window, operand 3, single buffered']
    #allocation5 [shape = 's32[1]{0}', space=sflag, size = 0x4, scoped, tag = 'scoped memory for tpu_custom_call.1']
    #allocation6 [shape = 'u8[65536]{0}', space=vmem, size = 0x10000, scoped, tag = 'input window, operand 4, single buffered']
    %11 = vsyncpa [#allocation3], 0
    %12 = vsyncpa [#allocation5], 0
    // Predicated region
    $region2: #{tpu_custom_call.1} parent=1 // pred_check
      _
    $region3: #{tpu_custom_call.1} parent=1 // pred_check_branch
      %14 = sbr.rel (0) target = $region5
    $region4: #{tpu_custom_call.1} parent=1 // pred_region
      %s16 = ssub.s32 32, 32
      %17 = vsyncadd [#allocation3], %s16
      %s19 = sshll.u32 [#allocation2], 4
      %s20 = int_to_ptr.vmem [resolvable:$true] %s19
      %22 = dma.hbm_to_vmem [thread:$0]  %s0, 32, %s20, [#allocation3]
    $region5: #{tpu_custom_call.1} parent=1 // pred_fallthru
      _
    // Predicated region
    $region6: #{tpu_custom_call.1} parent=1 // pred_check
      _
    $region7: #{tpu_custom_call.1} parent=1 // pred_check_branch
      %24 = sbr.rel (0) target = $region9
    $region8: #{tpu_custom_call.1} parent=1 // pred_region
      _
    $region9: #{tpu_custom_call.1} parent=1 // pred_fallthru
      _
    // Predicated region
    $region10: #{tpu_custom_call.1} parent=1 // pred_check
      _
    $region11: #{tpu_custom_call.1} parent=1 // pred_check_branch
      %26 = sbr.rel (0) target = $region13
    $region12: #{tpu_custom_call.1} parent=1 // pred_region
      _
    $region13: #{tpu_custom_call.1} parent=1 // pred_fallthru
      _
    // Predicated region
    $region14: #{tpu_custom_call.1} parent=1 // pred_check
      _
    $region15: #{tpu_custom_call.1} parent=1 // pred_check_branch
      %28 = sbr.rel (0) target = $region17
    $region16: #{tpu_custom_call.1} parent=1 // pred_region
      %s30 = ssub.s32 8704, 8704
      %31 = vsyncadd [#allocation5], %s30
      %s32 = sshll.u32 [#allocation4], 4
      %s33 = int_to_ptr.vmem [resolvable:$true] %s32
      %38 = dma.hbm_to_vmem [thread:$0]  %s3, 8704, %s33, [#allocation5], 128, 128, 8
    $region17: #{tpu_custom_call.1} parent=1 // pred_fallthru
      _
    // Predicated region
    $region18: #{tpu_custom_call.1} parent=1 // pred_check
      _
    $region19: #{tpu_custom_call.1} parent=1 // pred_check_branch
      %40 = sbr.rel (0) target = $region21
    $region20: #{tpu_custom_call.1} parent=1 // pred_region
      %s42 = ssub.s32 2048, 2048
      %43 = vsyncadd [#allocation5], %s42
      %s44 = sshll.u32 [#allocation6], 4
      %s45 = int_to_ptr.vmem [resolvable:$true] %s44
      %50 = dma.hbm_to_vmem [thread:$0]  %s4, 2048, %s45, [#allocation5], 128, 128, 8
    $region21: #{tpu_custom_call.1} parent=1 // pred_fallthru
      _
    // Predicated region
    $region22: #{tpu_custom_call.1} parent=1 // pred_check
      _
    $region23: #{tpu_custom_call.1} parent=1 // pred_check_branch
      %52 = sbr.rel (0) target = $region25
    $region24: #{tpu_custom_call.1} parent=1 // pred_region
      _
    $region25: #{tpu_custom_call.1} parent=1 // pred_fallthru
      _
    // Predicated region
    $region26: #{tpu_custom_call.1} parent=1 // pred_check
      _
    $region27: #{tpu_custom_call.1} parent=1 // pred_check_branch
      %54 = sbr.rel (0) target = $region29
    $region28: #{tpu_custom_call.1} parent=1 // pred_region
      %55 = dma.done [#allocation3], 32
    $region29: #{tpu_custom_call.1} parent=1 // pred_fallthru
      _
    // Predicated region
    $region30: #{tpu_custom_call.1} parent=1 // pred_check
      _
    $region31: #{tpu_custom_call.1} parent=1 // pred_check_branch
      %57 = sbr.rel (0) target = $region33
    $region32: #{tpu_custom_call.1} parent=1 // pred_region
      %58 = dma.done [#allocation5], 8704
    $region33: #{tpu_custom_call.1} parent=1 // pred_fallthru
      _
    // Predicated region
    $region34: #{tpu_custom_call.1} parent=1 // pred_check
      _
    $region35: #{tpu_custom_call.1} parent=1 // pred_check_branch
      %60 = sbr.rel (0) target = $region37
    $region36: #{tpu_custom_call.1} parent=1 // pred_region
      %61 = dma.done [#allocation5], 2048
    $region37: #{tpu_custom_call.1} parent=1 // pred_fallthru
      _
    %v62 = vld [vmem:[#allocation2] sm:$0x3]
    %v63 = vunpack.c.l.bf16 %v62
    %v64 = vld [vmem:[%s1] sm:$0x1]
    %v65 = vunpack.c.l.bf16 %v64
    %v66 = vld [vmem:[%s2] sm:$0x3]
    %v67 = vunpack.c.l.bf16 %v66
    %v68 = vld [vmem:[%s5] sm:$0x1]
    %v69 = vld [vmem:[%s5 + $0x1] sm:$0x1]
    %v70 = vld [vmem:[%s5 + $0x2] sm:$0x1]
    %v71 = vld [vmem:[%s5 + $0x3] sm:$0x1]
    %v72 = vld [vmem:[#allocation4] sm:$0xff]
    %v73 = vld [vmem:[#allocation4 + $0x8] sm:$0xff]
    %v74 = vld [vmem:[#allocation4 + $0x10] sm:$0xff]
    %v75 = vld [vmem:[#allocation4 + $0x18] sm:$0xff]
    %v76 = vld [vmem:[#allocation4 + $0x20] sm:$0xff]
    %v77 = vld [vmem:[#allocation4 + $0x28] sm:$0xff]
    %v78 = vld [vmem:[#allocation4 + $0x30] sm:$0xff]
    %v79 = vld [vmem:[#allocation4 + $0x38] sm:$0xff]
    %v80 = vld [vmem:[#allocation4 + $0x40] sm:$0xff]
    %v81 = vld [vmem:[#allocation4 + $0x48] sm:$0xff]
    %v82 = vld [vmem:[#allocation4 + $0x50] sm:$0xff]
    %v83 = vld [vmem:[#allocation4 + $0x58] sm:$0xff]
    %v84 = vld [vmem:[#allocation4 + $0x60] sm:$0xff]
    %v85 = vld [vmem:[#allocation4 + $0x68] sm:$0xff]
    %v86 = vld [vmem:[#allocation4 + $0x70] sm:$0xff]
    %v87 = vld [vmem:[#allocation4 + $0x78] sm:$0xff]
    %v88 = vld [vmem:[#allocation4 + $0x80] sm:$0xff]
    %v89 = vld [vmem:[#allocation4 + $0x88] sm:$0xff]
    %v90 = vld [vmem:[#allocation4 + $0x90] sm:$0xff]
    %v91 = vld [vmem:[#allocation4 + $0x98] sm:$0xff]
    %v92 = vld [vmem:[#allocation4 + $0xa0] sm:$0xff]
    %v93 = vld [vmem:[#allocation4 + $0xa8] sm:$0xff]
    %v94 = vld [vmem:[#allocation4 + $0xb0] sm:$0xff]
    %v95 = vld [vmem:[#allocation4 + $0xb8] sm:$0xff]
    %v96 = vld [vmem:[#allocation4 + $0xc0] sm:$0xff]
    %v97 = vld [vmem:[#allocation4 + $0xc8] sm:$0xff]
    %v98 = vld [vmem:[#allocation4 + $0xd0] sm:$0xff]
    %v99 = vld [vmem:[#allocation4 + $0xd8] sm:$0xff]
    %v100 = vld [vmem:[#allocation4 + $0xe0] sm:$0xff]
    %v101 = vld [vmem:[#allocation4 + $0xe8] sm:$0xff]
    %v102 = vld [vmem:[#allocation4 + $0xf0] sm:$0xff]
    %v103 = vld [vmem:[#allocation4 + $0xf8] sm:$0xff]
    %v104 = vld [vmem:[#allocation4 + $0x100] sm:$0xff]
    %v105 = vld [vmem:[#allocation4 + $0x108] sm:$0xff]
    %v106 = vld [vmem:[#allocation4 + $0x110] sm:$0xff]
    %v107 = vld [vmem:[#allocation4 + $0x118] sm:$0xff]
    %v108 = vld [vmem:[#allocation4 + $0x120] sm:$0xff]
    %v109 = vld [vmem:[#allocation4 + $0x128] sm:$0xff]
    %v110 = vld [vmem:[#allocation4 + $0x130] sm:$0xff]
    %v111 = vld [vmem:[#allocation4 + $0x138] sm:$0xff]
    %v112 = vld [vmem:[#allocation4 + $0x140] sm:$0xff]
    %v113 = vld [vmem:[#allocation4 + $0x148] sm:$0xff]
    %v114 = vld [vmem:[#allocation4 + $0x150] sm:$0xff]
    %v115 = vld [vmem:[#allocation4 + $0x158] sm:$0xff]
    %v116 = vld [vmem:[#allocation4 + $0x160] sm:$0xff]
    %v117 = vld [vmem:[#allocation4 + $0x168] sm:$0xff]
    %v118 = vld [vmem:[#allocation4 + $0x170] sm:$0xff]
    %v119 = vld [vmem:[#allocation4 + $0x178] sm:$0xff]
    %120 = vmatprep.subr.mxu0 0.0
    %121 = vmatpush1.msra.mxu0 %v104
    %122 = vmatprep.subr.mxu0 0.0
    %123 = vmatpush1.msra.mxu0 %v105
    %124 = vmatprep.subr.mxu0 0.0
    %125 = vmatpush1.msra.mxu0 %v106
    %126 = vmatprep.subr.mxu0 0.0
    %127 = vmatpush1.msra.mxu0 %v107
    %128 = vmatprep.subr.mxu0 0.0
    %129 = vmatpush1.msra.mxu0 %v108
    %130 = vmatprep.subr.mxu0 0.0
    %131 = vmatpush1.msra.mxu0 %v109
    %132 = vmatprep.subr.mxu0 0.0
    %133 = vmatpush1.msra.mxu0 %v110
    %134 = vmatprep.subr.mxu0 0.0
    %135 = vmatpush1.msra.mxu0 %v111
    %136 = vmatprep.subr.mxu0 0.0
    %137 = vmatpush1.msra.mxu0 %v112
    %138 = vmatprep.subr.mxu0 0.0
    %139 = vmatpush1.msra.mxu0 %v113
    %140 = vmatprep.subr.mxu0 0.0
    %141 = vmatpush1.msra.mxu0 %v114
    %142 = vmatprep.subr.mxu0 0.0
    %143 = vmatpush1.msra.mxu0 %v115
    %144 = vmatprep.subr.mxu0 0.0
    %145 = vmatpush1.msra.mxu0 %v116
    %146 = vmatprep.subr.mxu0 0.0
    %147 = vmatpush1.msra.mxu0 %v117
    %148 = vmatprep.subr.mxu0 0.0
    %149 = vmatpush1.msra.mxu0 %v118
    %150 = vmatprep.subr.mxu0 0.0
    %151 = vmatpush1.msra.mxu0 %v119
    %152 = vmatprep.subr.mxu0 0.0
    %153 = vmatpush1.msra.mxu0 0.0
    %154 = vmatprep.subr.mxu0 0.0
    %155 = vmatpush1.msra.mxu0 0.0
    %156 = vmatprep.subr.mxu0 0.0
    %157 = vmatpush1.msra.mxu0 0.0
    %158 = vmatprep.subr.mxu0 0.0
    %159 = vmatpush1.msra.mxu0 0.0
    %160 = vmatprep.subr.mxu0 0.0
    %161 = vmatpush1.msra.mxu0 0.0
    %162 = vmatprep.subr.mxu0 0.0
    %163 = vmatpush1.msra.mxu0 0.0
    %164 = vmatprep.subr.mxu0 0.0
    %165 = vmatpush1.msra.mxu0 0.0
    %166 = vmatprep.subr.mxu0 0.0
    %167 = vmatpush1.msra.mxu0 0.0
    %168 = vmatprep.subr.mxu0 0.0
    %169 = vmatpush1.msra.mxu0 0.0
    %170 = vmatprep.subr.mxu0 0.0
    %171 = vmatpush1.msra.mxu0 0.0
    %172 = vmatprep.subr.mxu0 0.0
    %173 = vmatpush1.msra.mxu0 0.0
    %174 = vmatprep.subr.mxu0 0.0
    %175 = vmatpush1.msra.mxu0 0.0
    %176 = vmatprep.subr.mxu0 0.0
    %177 = vmatpush1.msra.mxu0 0.0
    %178 = vmatprep.subr.mxu0 0.0
    %179 = vmatpush1.msra.mxu0 0.0
    %180 = vmatprep.subr.mxu0 0.0
    %181 = vmatpush1.msra.mxu0 0.0
    %182 = vmatprep.subr.mxu0 0.0
    %183 = vmatpush1.msra.mxu0 0.0
    %184 = vmatprep.mubr.f32.mxu0 0.0
    %185 = vmatmul.mubr.f32.gmra.mrb[0].mxu0 %v65
    %v186 = vpop.f32.mrb[0].mxu0
    %v187 = vadd.f32 0.0, %v186
    %v188 = vpop.f32.mrb[0].mxu0
    %189 = vdwg.mxu0
    %v192 = vunpack.c.l.s4 1983009808
    %v193 = vunpack.c.0.s8 %v192
    %v194 = vlaneseq
    %v195 = vshrl.u32 %v194, 7
    %v196 = vsub.s32 %v193, %v195
    %v197 = vrot.slane %v63, %v196
    %v198 = vcombine.high %v197, %v197
    %201 = vmatprep.subr.mxu0 0.0
    %202 = vmatpush1.msra.mxu0 %v72
    %203 = vmatprep.subr.mxu0 0.0
    %204 = vmatpush1.msra.mxu0 %v73
    %205 = vmatprep.subr.mxu0 0.0
    %206 = vmatpush1.msra.mxu0 %v74
    %207 = vmatprep.subr.mxu0 0.0
    %208 = vmatpush1.msra.mxu0 %v75
    %209 = vmatprep.subr.mxu0 0.0
    %210 = vmatpush1.msra.mxu0 %v76
    %211 = vmatprep.subr.mxu0 0.0
    %212 = vmatpush1.msra.mxu0 %v77
    %213 = vmatprep.subr.mxu0 0.0
    %214 = vmatpush1.msra.mxu0 %v78
    %215 = vmatprep.subr.mxu0 0.0
    %216 = vmatpush1.msra.mxu0 %v79
    %217 = vmatprep.subr.mxu0 0.0
    %218 = vmatpush1.msra.mxu0 %v80
    %219 = vmatprep.subr.mxu0 0.0
    %220 = vmatpush1.msra.mxu0 %v81
    %221 = vmatprep.subr.mxu0 0.0
    %222 = vmatpush1.msra.mxu0 %v82
    %223 = vmatprep.subr.mxu0 0.0
    %224 = vmatpush1.msra.mxu0 %v83
    %225 = vmatprep.subr.mxu0 0.0
    %226 = vmatpush1.msra.mxu0 %v84
    %227 = vmatprep.subr.mxu0 0.0
    %228 = vmatpush1.msra.mxu0 %v85
    %229 = vmatprep.subr.mxu0 0.0
    %230 = vmatpush1.msra.mxu0 %v86
    %231 = vmatprep.subr.mxu0 0.0
    %232 = vmatpush1.msra.mxu0 %v87
    %233 = vmatprep.subr.mxu0 0.0
    %234 = vmatpush1.msra.mxu0 %v88
    %235 = vmatprep.subr.mxu0 0.0
    %236 = vmatpush1.msra.mxu0 %v89
    %237 = vmatprep.subr.mxu0 0.0
    %238 = vmatpush1.msra.mxu0 %v90
    %239 = vmatprep.subr.mxu0 0.0
    %240 = vmatpush1.msra.mxu0 %v91
    %241 = vmatprep.subr.mxu0 0.0
    %242 = vmatpush1.msra.mxu0 %v92
    %243 = vmatprep.subr.mxu0 0.0
    %244 = vmatpush1.msra.mxu0 %v93
    %245 = vmatprep.subr.mxu0 0.0
    %246 = vmatpush1.msra.mxu0 %v94
    %247 = vmatprep.subr.mxu0 0.0
    %248 = vmatpush1.msra.mxu0 %v95
    %249 = vmatprep.subr.mxu0 0.0
    %250 = vmatpush1.msra.mxu0 %v96
    %251 = vmatprep.subr.mxu0 0.0
    %252 = vmatpush1.msra.mxu0 %v97
    %253 = vmatprep.subr.mxu0 0.0
    %254 = vmatpush1.msra.mxu0 %v98
    %255 = vmatprep.subr.mxu0 0.0
    %256 = vmatpush1.msra.mxu0 %v99
    %257 = vmatprep.subr.mxu0 0.0
    %258 = vmatpush1.msra.mxu0 %v100
    %259 = vmatprep.subr.mxu0 0.0
    %260 = vmatpush1.msra.mxu0 %v101
    %261 = vmatprep.subr.mxu0 0.0
    %262 = vmatpush1.msra.mxu0 %v102
    %263 = vmatprep.subr.mxu0 0.0
    %264 = vmatpush1.msra.mxu0 %v103
    %265 = vmatprep.mubr.f32.mxu0 %v198
    %266 = vmatmul.mubr.f32.gmra.mrb[0].mxu0 %v197
    %v267 = vpop.f32.mrb[0].mxu0
    %v268 = vadd.f32 %v187, %v267
    %v269 = vpop.f32.mrb[0].mxu0
    %270 = vdwg.mxu0
    %v271 = vld [vmem:[#allocation4 + $0x180] sm:$0xff]
    %v272 = vld [vmem:[#allocation4 + $0x188] sm:$0xff]
    %v273 = vld [vmem:[#allocation4 + $0x190] sm:$0xff]
    %v274 = vld [vmem:[#allocation4 + $0x198] sm:$0xff]
    %v275 = vld [vmem:[#allocation4 + $0x1a0] sm:$0xff]
    %v276 = vld [vmem:[#allocation4 + $0x1a8] sm:$0xff]
    %v277 = vld [vmem:[#allocation4 + $0x1b0] sm:$0xff]
    %v278 = vld [vmem:[#allocation4 + $0x1b8] sm:$0xff]
    %v279 = vld [vmem:[#allocation4 + $0x1c0] sm:$0xff]
    %v280 = vld [vmem:[#allocation4 + $0x1c8] sm:$0xff]
    %v281 = vld [vmem:[#allocation4 + $0x1d0] sm:$0xff]
    %v282 = vld [vmem:[#allocation4 + $0x1d8] sm:$0xff]
    %v283 = vld [vmem:[#allocation4 + $0x1e0] sm:$0xff]
    %v284 = vld [vmem:[#allocation4 + $0x1e8] sm:$0xff]
    %v285 = vld [vmem:[#allocation4 + $0x1f0] sm:$0xff]
    %v286 = vld [vmem:[#allocation4 + $0x1f8] sm:$0xff]
    %v287 = vld [vmem:[#allocation4 + $0x200] sm:$0xff]
    %v288 = vld [vmem:[#allocation4 + $0x208] sm:$0xff]
    %v289 = vld [vmem:[#allocation4 + $0x210] sm:$0xff]
    %v290 = vld [vmem:[#allocation4 + $0x218] sm:$0xff]
    %v293 = vunpack.c.l.s4 1983009808
    %v294 = vunpack.c.0.s8 %v293
    %v295 = vlaneseq
    %v296 = vshrl.u32 %v295, 7
    %v297 = vsub.s32 %v294, %v296
    %v298 = vrot.slane %v67, %v297
    %v299 = vcombine.high %v298, %v298
    %vm301 = vcmask 261120
    %v302 = vsel %vm301, %v299, 0
    %304 = vmatprep.subr.mxu0 0.0
    %305 = vmatpush1.msra.mxu0 %v271
    %306 = vmatprep.subr.mxu0 0.0
    %307 = vmatpush1.msra.mxu0 %v272
    %308 = vmatprep.subr.mxu0 0.0
    %309 = vmatpush1.msra.mxu0 %v273
    %310 = vmatprep.subr.mxu0 0.0
    %311 = vmatpush1.msra.mxu0 %v274
    %312 = vmatprep.subr.mxu0 0.0
    %313 = vmatpush1.msra.mxu0 %v275
    %314 = vmatprep.subr.mxu0 0.0
    %315 = vmatpush1.msra.mxu0 %v276
    %316 = vmatprep.subr.mxu0 0.0
    %317 = vmatpush1.msra.mxu0 %v277
    %318 = vmatprep.subr.mxu0 0.0
    %319 = vmatpush1.msra.mxu0 %v278
    %320 = vmatprep.subr.mxu0 0.0
    %321 = vmatpush1.msra.mxu0 %v279
    %322 = vmatprep.subr.mxu0 0.0
    %323 = vmatpush1.msra.mxu0 %v280
    %324 = vmatprep.subr.mxu0 0.0
    %325 = vmatpush1.msra.mxu0 %v281
    %326 = vmatprep.subr.mxu0 0.0
    %327 = vmatpush1.msra.mxu0 %v282
    %328 = vmatprep.subr.mxu0 0.0
    %329 = vmatpush1.msra.mxu0 %v283
    %330 = vmatprep.subr.mxu0 0.0
    %331 = vmatpush1.msra.mxu0 %v284
    %332 = vmatprep.subr.mxu0 0.0
    %333 = vmatpush1.msra.mxu0 %v285
    %334 = vmatprep.subr.mxu0 0.0
    %335 = vmatpush1.msra.mxu0 %v286
    %336 = vmatprep.subr.mxu0 0.0
    %337 = vmatpush1.msra.mxu0 %v287
    %338 = vmatprep.subr.mxu0 0.0
    %339 = vmatpush1.msra.mxu0 %v288
    %340 = vmatprep.subr.mxu0 0.0
    %341 = vmatpush1.msra.mxu0 %v289
    %342 = vmatprep.subr.mxu0 0.0
    %343 = vmatpush1.msra.mxu0 %v290
    %344 = vmatprep.subr.mxu0 0.0
    %345 = vmatpush1.msra.mxu0 0.0
    %346 = vmatprep.subr.mxu0 0.0
    %347 = vmatpush1.msra.mxu0 0.0
    %348 = vmatprep.subr.mxu0 0.0
    %349 = vmatpush1.msra.mxu0 0.0
    %350 = vmatprep.subr.mxu0 0.0
    %351 = vmatpush1.msra.mxu0 0.0
    %352 = vmatprep.subr.mxu0 0.0
    %353 = vmatpush1.msra.mxu0 0.0
    %354 = vmatprep.subr.mxu0 0.0
    %355 = vmatpush1.msra.mxu0 0.0
    %356 = vmatprep.subr.mxu0 0.0
    %357 = vmatpush1.msra.mxu0 0.0
    %358 = vmatprep.subr.mxu0 0.0
    %359 = vmatpush1.msra.mxu0 0.0
    %360 = vmatprep.subr.mxu0 0.0
    %361 = vmatpush1.msra.mxu0 0.0
    %362 = vmatprep.subr.mxu0 0.0
    %363 = vmatpush1.msra.mxu0 0.0
    %364 = vmatprep.subr.mxu0 0.0
    %365 = vmatpush1.msra.mxu0 0.0
    %366 = vmatprep.subr.mxu0 0.0
    %367 = vmatpush1.msra.mxu0 0.0
    %368 = vmatprep.mubr.f32.mxu0 %v302
    %369 = vmatmul.mubr.f32.gmra.mrb[0].mxu0 %v298
    %v370 = vpop.f32.mrb[0].mxu0
    %v371 = vadd.f32 0.0, %v370
    %v372 = vpop.f32.mrb[0].mxu0
    %373 = vdwg.mxu0
    %v374 = vadd.f32 %v268, %v371
    %v375 = vlaneseq
    %v376 = vshrl.u32 %v375, 7
    %v377 = vsub.s32 0, %v376
    %v378 = vrot.slane %v68, %v377
    %v379 = vadd.f32 %v374, %v378
    %v380 = vmax.f32 %v379, 0.0
    %v381 = vld [vmem:[#allocation6] sm:$0xff]
    %v382 = vld [vmem:[#allocation6 + $0x8] sm:$0xff]
    %v383 = vld [vmem:[#allocation6 + $0x10] sm:$0xff]
    %v384 = vld [vmem:[#allocation6 + $0x18] sm:$0xff]
    %v385 = vld [vmem:[#allocation6 + $0x20] sm:$0xff]
    %v386 = vld [vmem:[#allocation6 + $0x28] sm:$0xff]
    %v387 = vld [vmem:[#allocation6 + $0x30] sm:$0xff]
    %v388 = vld [vmem:[#allocation6 + $0x38] sm:$0xff]
    %v389 = vld [vmem:[#allocation6 + $0x40] sm:$0xff]
    %v390 = vld [vmem:[#allocation6 + $0x48] sm:$0xff]
    %v391 = vld [vmem:[#allocation6 + $0x50] sm:$0xff]
    %v392 = vld [vmem:[#allocation6 + $0x58] sm:$0xff]
    %v393 = vld [vmem:[#allocation6 + $0x60] sm:$0xff]
    %v394 = vld [vmem:[#allocation6 + $0x68] sm:$0xff]
    %v395 = vld [vmem:[#allocation6 + $0x70] sm:$0xff]
    %v396 = vld [vmem:[#allocation6 + $0x78] sm:$0xff]
    %v397 = vlaneseq
    %v398 = vshrl.u32 %v397, 7
    %v399 = vsub.s32 0, %v398
    %v400 = vrot.slane %v69, %v399
    %401 = vmatprep.subr.mxu0 0.0
    %402 = vmatpush1.msra.mxu0 %v381
    %403 = vmatprep.subr.mxu0 0.0
    %404 = vmatpush1.msra.mxu0 %v382
    %405 = vmatprep.subr.mxu0 0.0
    %406 = vmatpush1.msra.mxu0 %v383
    %407 = vmatprep.subr.mxu0 0.0
    %408 = vmatpush1.msra.mxu0 %v384
    %409 = vmatprep.subr.mxu0 0.0
    %410 = vmatpush1.msra.mxu0 %v385
    %411 = vmatprep.subr.mxu0 0.0
    %412 = vmatpush1.msra.mxu0 %v386
    %413 = vmatprep.subr.mxu0 0.0
    %414 = vmatpush1.msra.mxu0 %v387
    %415 = vmatprep.subr.mxu0 0.0
    %416 = vmatpush1.msra.mxu0 %v388
    %417 = vmatprep.subr.mxu0 0.0
    %418 = vmatpush1.msra.mxu0 %v389
    %419 = vmatprep.subr.mxu0 0.0
    %420 = vmatpush1.msra.mxu0 %v390
    %421 = vmatprep.subr.mxu0 0.0
    %422 = vmatpush1.msra.mxu0 %v391
    %423 = vmatprep.subr.mxu0 0.0
    %424 = vmatpush1.msra.mxu0 %v392
    %425 = vmatprep.subr.mxu0 0.0
    %426 = vmatpush1.msra.mxu0 %v393
    %427 = vmatprep.subr.mxu0 0.0
    %428 = vmatpush1.msra.mxu0 %v394
    %429 = vmatprep.subr.mxu0 0.0
    %430 = vmatpush1.msra.mxu0 %v395
    %431 = vmatprep.subr.mxu0 0.0
    %432 = vmatpush1.msra.mxu0 %v396
    %433 = vmatprep.subr.mxu0 0.0
    %434 = vmatpush1.msra.mxu0 0.0
    %435 = vmatprep.subr.mxu0 0.0
    %436 = vmatpush1.msra.mxu0 0.0
    %437 = vmatprep.subr.mxu0 0.0
    %438 = vmatpush1.msra.mxu0 0.0
    %439 = vmatprep.subr.mxu0 0.0
    %440 = vmatpush1.msra.mxu0 0.0
    %441 = vmatprep.subr.mxu0 0.0
    %442 = vmatpush1.msra.mxu0 0.0
    %443 = vmatprep.subr.mxu0 0.0
    %444 = vmatpush1.msra.mxu0 0.0
    %445 = vmatprep.subr.mxu0 0.0
    %446 = vmatpush1.msra.mxu0 0.0
    %447 = vmatprep.subr.mxu0 0.0
    %448 = vmatpush1.msra.mxu0 0.0
    %449 = vmatprep.subr.mxu0 0.0
    %450 = vmatpush1.msra.mxu0 0.0
    %451 = vmatprep.subr.mxu0 0.0
    %452 = vmatpush1.msra.mxu0 0.0
    %453 = vmatprep.subr.mxu0 0.0
    %454 = vmatpush1.msra.mxu0 0.0
    %455 = vmatprep.subr.mxu0 0.0
    %456 = vmatpush1.msra.mxu0 0.0
    %457 = vmatprep.subr.mxu0 0.0
    %458 = vmatpush1.msra.mxu0 0.0
    %459 = vmatprep.subr.mxu0 0.0
    %460 = vmatpush1.msra.mxu0 0.0
    %461 = vmatprep.subr.mxu0 0.0
    %462 = vmatpush1.msra.mxu0 0.0
    %463 = vmatprep.subr.mxu0 0.0
    %464 = vmatpush1.msra.mxu0 0.0
    %465 = vmatprep.mubr.f32.mxu0 0.0
    %466 = vmatmul.mubr.f32.gmra.mrb[0].mxu0 %v380
    %v467 = vpop.f32.mrb[0].mxu0
    %v468 = vadd.f32 %v400, %v467
    %v469 = vpop.f32.mrb[0].mxu0
    %470 = vdwg.mxu0
    %v471 = vmax.f32 %v468, 0.0
    %v472 = vlaneseq
    %v473 = vshrl.u32 %v472, 7
    %v474 = vsub.s32 0, %v473
    %v475 = vrot.slane %v70, %v474
    %v476 = vmul.f32 %v471, %v475
    %vm477 = vcmask 1041408
    %v478 = vsel %vm477, %v476, 0.0
    %479 = vadd.xlane.f32.xlu0 %v478
    %v480 = vpop.xlane.xlu0 %479
    %v481 = vlaneseq
    %v482 = vshrl.u32 %v481, 7
    %v483 = vsub.s32 0, %v482
    %v484 = vrot.slane %v71, %v483
    %v485 = vadd.f32 %v480, %v484
    %vm486 = vcmask 1024
    %487 = vst.msk [vmem:[%s6] sm:$0x3] %vm486, %v485
    // Predicated region
    $region38: #{tpu_custom_call.1} parent=1 // pred_check
      _
    $region39: #{tpu_custom_call.1} parent=1 // pred_check_branch
      %489 = sbr.rel (0) target = $region41
    $region40: #{tpu_custom_call.1} parent=1 // pred_region
      _
    $region41: #{tpu_custom_call.1} parent=1 // pred_fallthru
      _
    // Predicated region
    $region42: #{tpu_custom_call.1} parent=1 // pred_check
      _
    $region43: #{tpu_custom_call.1} parent=1 // pred_check_branch
      %491 = sbr.rel (0) target = $region45
    $region44: #{tpu_custom_call.1} parent=1 // pred_region
      _
    $region45: #{tpu_custom_call.1} parent=1 // pred_fallthru
      _
    %492 = vsyncpa [#allocation3], 1
    %493 = vsyncpa [#allocation5], 1

</llo_original>
